<compile_context>
chip_gen: v7x
topology: tpu7x:2x2x1
jax: 0.10.0
libtpu: 0.0.40
codegen_flags: <defaults>
</compile_context>

<pallas_src>
import functools
import math

import jax
import jax.numpy as jnp
from jax import lax
from jax.experimental import pallas as pl
from jax.experimental.pallas import tpu as pltpu


# --------------------------------- kernel -------------------------------------
def _attn_kernel(q_ref, k_ref, v_ref, o_ref, *, n_bisect, n_newton, scale):
    q = q_ref[...]                      # (G, Tq, D)   input dtype
    k = k_ref[...]                      # (G, Sk, D)   input dtype
    v = v_ref[...]                      # (G, Sk, D)   input dtype

    # Fold 1/sqrt(d_k) and the entmax15 "x/2" into the small (G,Tq,D) q tile
    # (Sk/D x fewer multiplies than scaling the (G,Tq,Sk) scores). Scale in
    # f32 and cast back once (no-op for f32 inputs).
    qs = (q.astype(jnp.float32) * scale).astype(q.dtype)

    # z = scores / 2, batched over packed heads, contracting the last dims
    # directly (canonical MXU transposed-weight form, same as flash reference;
    # no XLU transpose of k). f32 accumulation on the MXU.
    z = lax.dot_general(
        qs, k,
        dimension_numbers=(((2,), (2,)), ((0,), (0,))),
        preferred_element_type=jnp.float32)             # (G, Tq, Sk) f32

    # ---------------- 1.5-entmax over the last axis ----------------
    # p_i = relu(z_i - tau)^2 with tau s.t. sum_i p_i = 1.
    sk = z.shape[-1]
    tau = jnp.max(z, axis=-1, keepdims=True) - 1.0      # f(tau) >= 0 always
    dm0 = 1.0 - (1.0 / sk) ** 0.5                       # initial bracket (< 1)

    def bisect_body(_, carry):
        tau_c, dm_c = carry
        dm_c = dm_c * 0.5
        tau_m = tau_c + dm_c
        r = jnp.maximum(z - tau_m, 0.0)
        f_m = jnp.sum(r * r, axis=-1, keepdims=True) - 1.0
        # f(tau_lo) >= 0 by construction, so keeping the f >= 0 side suffices.
        tau_c = jnp.where(f_m >= 0.0, tau_m, tau_c)
        return tau_c, dm_c

    tau, _ = lax.fori_loop(
        0, n_bisect, bisect_body,
        (tau, jnp.asarray(dm0, dtype=jnp.float32)),
        unroll=True)

    # Newton polish: f(tau) = sum relu(z-tau)^2 - 1, f'(tau) = -2 sum relu.
    # Starting from the f >= 0 side of a convex decreasing f, Newton is
    # monotone (no overshoot), so g = sum relu stays >= 1; the tiny-guard is
    # belt-and-suspenders. approx reciprocal (EUP) is fine: Newton self-corrects.
    for _ in range(n_newton):
        r = jnp.maximum(z - tau, 0.0)
        f = jnp.sum(r * r, axis=-1, keepdims=True) - 1.0
        g = jnp.maximum(jnp.sum(r, axis=-1, keepdims=True), 1e-30)  # = -f'/2
        tau = tau + (0.5 * f) * pl.reciprocal(g, approx=True)

    # Final residual pass: doubles as the (unnormalized) probability.
    r = jnp.maximum(z - tau, 0.0)
    p = r * r                                            # (G, Tq, Sk) f32
    l = jnp.sum(p, axis=-1, keepdims=True)               # (G, Tq, 1)

    # att @ v with f32 accumulation; normalization deferred to the (G,Tq,D)
    # output (identical result, Sk/D x cheaper than normalizing p).
    out = lax.dot_general(
        p.astype(v.dtype), v,
        dimension_numbers=(((2,), (1,)), ((0,), (0,))),
        preferred_element_type=jnp.float32)              # (G, Tq, D) f32
    out = out * pl.reciprocal(l, approx=False)
    o_ref[...] = out.astype(o_ref.dtype)


# --------------------------------- tiling --------------------------------------
def _vmem_capacity_bytes():
    try:
        return int(pltpu.get_tpu_info().vmem_capacity_bytes)
    except Exception:
        return 64 * 1024 * 1024        # v7x per-TC floor -> safe everywhere


def _choose_tiles(BH, Sq, Sk, D, itemsize):
    """Pick (head-group G, q-tile Tq, padded Sq, vmem_limit_bytes)."""
    cap = _vmem_capacity_bytes()
    # ~96 MiB on 128 MiB parts (v5e/v6e), ~48 MiB on 64 MiB v7x.
    vmem_limit = max(32 << 20, min((cap * 3) // 4, 96 << 20))
    budget = int(vmem_limit * 0.85)

    # Head packing: G heads per program (fewer grid steps, batched matmuls).
    # Keep at least 2 programs on the parallel axis for 2-TC sharding.
    g_cap = max(1, min(BH, 128 // max(D, 1), 8, max(1, BH // 2)))
    G = 1
    for g in range(g_cap, 0, -1):
        if BH % g == 0 and 4 * g * Sk * D * itemsize <= budget // 2:
            G = g
            break

    kv_bytes = 4 * G * Sk * D * itemsize        # k,v double-buffered

    def fits(tq):
        qo_bytes = 4 * G * tq * D * itemsize    # q,o double-buffered
        tmp_bytes = 5 * G * tq * Sk * 4         # z / r / p f32 temporaries
        return kv_bytes + qo_bytes + tmp_bytes <= budget

    tq = 8
    for cand in (512, 256, 128, 64, 32, 16, 8):
        if fits(cand):
            tq = cand
            break
    # TODO(synk): for Sk so long that even Tq=8 blows VMEM, tile Sk with a
    # scratch-resident (Tq, Sk) z (two-pass entmax) instead of shrinking Tq.

    if Sq <= tq:
        return G, Sq, Sq, vmem_limit            # full-extent q block (legal)
    sq_pad = ((Sq + tq - 1) // tq) * tq         # pad instead of tiny tiles
    return G, tq, sq_pad, vmem_limit


# --------------------------------- wrapper -------------------------------------
def scaled_dot_product_attention(q, k, v, *, n_bisect=8, n_newton=2):
    """q, k, v: (B, H, S, D). Total entmax passes = n_bisect + n_newton + 1."""
    B, H, Sq, D = q.shape
    Sk = k.shape[2]
    BH = B * H
    qf = q.reshape(BH, Sq, D)
    kf = k.reshape(BH, Sk, D)
    vf = v.reshape(BH, Sk, D)

    itemsize = jnp.dtype(q.dtype).itemsize
    G, Tq, Sq_pad, vmem_limit = _choose_tiles(BH, Sq, Sk, D, itemsize)
    if Sq_pad != Sq:
        # Extra rows are independent entmax problems over zero scores; their
        # outputs are finite and sliced away below.
        qf = jnp.pad(qf, ((0, 0), (0, Sq_pad - Sq), (0, 0)))

    grid = (BH // G, Sq_pad // Tq)     # q-tile axis last -> k/v stay resident

    # TODO(synk): true lane-dense output for D < 128 (heads concatenated onto
    # the lane axis) needs an in-kernel block-diagonal contraction; head
    # grouping above recovers the grid-step/MXU-batching part of that win.
    kernel = functools.partial(
        _attn_kernel, n_bisect=n_bisect, n_newton=n_newton,
        scale=0.5 / math.sqrt(D))

    out = pl.pallas_call(
        kernel,
        out_shape=jax.ShapeDtypeStruct((BH, Sq_pad, D), q.dtype),
        grid_spec=pltpu.PrefetchScalarGridSpec(
            num_scalar_prefetch=0,
            grid=grid,
            in_specs=[
                pl.BlockSpec((G, Tq, D), lambda b, i: (b, i, 0)),
                # k/v block index independent of i -> loaded once per head group
                pl.BlockSpec((G, Sk, D), lambda b, i: (b, 0, 0)),
                pl.BlockSpec((G, Sk, D), lambda b, i: (b, 0, 0)),
            ],
            out_specs=pl.BlockSpec((G, Tq, D), lambda b, i: (b, i, 0)),
        ),
        compiler_params=pltpu.CompilerParams(
            # Shard only the head-group axis across TensorCores so both cores
            # keep their own k/v resident; q-tile axis is a plain inner loop.
            dimension_semantics=("parallel", "arbitrary"),
            vmem_limit_bytes=int(vmem_limit),
        ),
    )(qf, kf, vf)

    if Sq_pad != Sq:
        out = out[:, :Sq, :]
    return out.reshape(B, H, Sq, D)


# ---------------------------- pure-JAX reference --------------------------------
def _entmax15_exact_ref(x, axis=-1):
    """Exact sort-based 1.5-entmax (reference only)."""
    z = x / 2.0
    z_sorted = jnp.flip(jnp.sort(z, axis=axis), axis=axis)
    d = z.shape[axis]
    rho = jnp.arange(1, d + 1, dtype=z.dtype)
    mean = jnp.cumsum(z_sorted, axis=axis) / rho
    mean_sq = jnp.cumsum(z_sorted ** 2, axis=axis) / rho
    ss = rho * (mean_sq - mean ** 2)
    delta = (1.0 - ss) / rho
    tau = mean - jnp.sqrt(jnp.maximum(delta, 0.0))
    support = jnp.sum((tau <= z_sorted).astype(jnp.int32), axis=axis, keepdims=True)
    tau_star = jnp.take_along_axis(tau, support - 1, axis=axis)
    return jnp.maximum(z - tau_star, 0.0) ** 2


def _attention_ref(q, k, v):
    scores = jnp.einsum("bhqd,bhkd->bhqk", q, k) / math.sqrt(q.shape[-1])
    att = _entmax15_exact_ref(scores, axis=-1)
    return jnp.einsum("bhqk,bhkd->bhqd", att, v)


# ----------------------------------- main ---------------------------------------
if __name__ == "__main__":
    key = jax.random.PRNGKey(0)
    kq, kk, kv = jax.random.split(key, 3)
    B, H, Sq, Sk, D = 2, 2, 8, 16, 32
    q = jax.random.normal(kq, (B, H, Sq, D), dtype=jnp.float32)
    k = jax.random.normal(kk, (B, H, Sk, D), dtype=jnp.float32)
    v = jax.random.normal(kv, (B, H, Sk, D), dtype=jnp.float32)

    out = scaled_dot_product_attention(q, k, v)
    out = jax.block_until_ready(out)

    ref = _attention_ref(q, k, v)
    assert out.shape == (B, H, Sq, D)
    assert jnp.allclose(out, ref, atol=1e-4, rtol=1e-4), "mismatch vs reference"

    print("KERNEL_OK")
</pallas_src>

<mosaic_0001>
module attributes {stable_mosaic.version = 11 : i64} {
  func.func @_attn_kernel(%arg0: i32, %arg1: i32, %arg2: memref<2x8x32xf32, #tpu.memory_space<vmem>>, %arg3: memref<2x16x32xf32, #tpu.memory_space<vmem>>, %arg4: memref<2x16x32xf32, #tpu.memory_space<vmem>>, %arg5: memref<2x8x32xf32, #tpu.memory_space<vmem>>) attributes {dimension_semantics = [#tpu.dimension_semantics<parallel>, #tpu.dimension_semantics<arbitrary>], iteration_bounds = array<i64: 2, 1>, scalar_prefetch = 0 : i64, scratch_operands = 0 : i64, tpu.core_type = #tpu.core_type<tc>, window_params = [{transform_indices = @transform_0, window_bounds = array<i64: 2, 8, 32>}, {transform_indices = @transform_1, window_bounds = array<i64: 2, 16, 32>}, {transform_indices = @transform_2, window_bounds = array<i64: 2, 16, 32>}, {transform_indices = @transform_3, window_bounds = array<i64: 2, 8, 32>}]} {
    %c0 = arith.constant 0 : index
    %c0_0 = arith.constant 0 : index
    %c0_1 = arith.constant 0 : index
    %0 = vector.load %arg2[%c0, %c0_0, %c0_1] : memref<2x8x32xf32, #tpu.memory_space<vmem>>, vector<2x8x32xf32>
    %c0_2 = arith.constant 0 : index
    %c0_3 = arith.constant 0 : index
    %c0_4 = arith.constant 0 : index
    %1 = vector.load %arg3[%c0_2, %c0_3, %c0_4] : memref<2x16x32xf32, #tpu.memory_space<vmem>>, vector<2x16x32xf32>
    %c0_5 = arith.constant 0 : index
    %c0_6 = arith.constant 0 : index
    %c0_7 = arith.constant 0 : index
    %2 = vector.load %arg4[%c0_5, %c0_6, %c0_7] : memref<2x16x32xf32, #tpu.memory_space<vmem>>, vector<2x16x32xf32>
    %cst = arith.constant 0.0883883461 : f32
    %3 = vector.broadcast %cst : f32 to vector<2x8x32xf32>
    %4 = arith.mulf %0, %3 : vector<2x8x32xf32>
    %cst_8 = arith.constant dense<0.000000e+00> : vector<2x8x16xf32>
    %5 = tpu.matmul %4, %1, %cst_8 {dimension_numbers = #tpu.dot_dimension_numbers<[2], [2], [1], [1], [0, 0, 0, 1, 1, 1], [0], [0]>} : vector<2x8x32xf32>, vector<2x16x32xf32>, vector<2x8x16xf32> -> vector<2x8x16xf32>
    %cst_9 = arith.constant dense<0xFF800000> : vector<2x8xf32>
    %6 = vector.multi_reduction <maximumf>, %5, %cst_9 [2] : vector<2x8x16xf32> to vector<2x8xf32>
    %7 = vector.shape_cast %6 : vector<2x8xf32> to vector<2x8x1xf32>
    %cst_10 = arith.constant 1.000000e+00 : f32
    %8 = vector.broadcast %cst_10 : f32 to vector<2x8x1xf32>
    %9 = arith.subf %7, %8 : vector<2x8x1xf32>
    %cst_11 = arith.constant 7.500000e-01 : f32
    %c0_i32 = arith.constant 0 : i32
    %cst_12 = arith.constant 5.000000e-01 : f32
    %10 = arith.mulf %cst_11, %cst_12 : f32
    %11 = vector.broadcast %10 : f32 to vector<2x8x1xf32>
    %12 = arith.addf %9, %11 : vector<2x8x1xf32>
    %13 = vector.broadcast %12 : vector<2x8x1xf32> to vector<2x8x16xf32>
    %14 = arith.subf %5, %13 : vector<2x8x16xf32>
    %cst_13 = arith.constant 0.000000e+00 : f32
    %15 = vector.broadcast %cst_13 : f32 to vector<2x8x16xf32>
    %16 = arith.maximumf %14, %15 : vector<2x8x16xf32>
    %17 = arith.mulf %16, %16 : vector<2x8x16xf32>
    %cst_14 = arith.constant dense<0.000000e+00> : vector<2x8xf32>
    %18 = vector.multi_reduction <add>, %17, %cst_14 [2] : vector<2x8x16xf32> to vector<2x8xf32>
    %19 = vector.shape_cast %18 : vector<2x8xf32> to vector<2x8x1xf32>
    %cst_15 = arith.constant 1.000000e+00 : f32
    %20 = vector.broadcast %cst_15 : f32 to vector<2x8x1xf32>
    %21 = arith.subf %19, %20 : vector<2x8x1xf32>
    %cst_16 = arith.constant 0.000000e+00 : f32
    %22 = vector.broadcast %cst_16 : f32 to vector<2x8x1xf32>
    %23 = arith.cmpf oge, %21, %22 : vector<2x8x1xf32>
    %24 = arith.select %23, %12, %9 : vector<2x8x1xi1>, vector<2x8x1xf32>
    %c1_i32 = arith.constant 1 : i32
    %cst_17 = arith.constant 5.000000e-01 : f32
    %25 = arith.mulf %10, %cst_17 : f32
    %26 = vector.broadcast %25 : f32 to vector<2x8x1xf32>
    %27 = arith.addf %24, %26 : vector<2x8x1xf32>
    %28 = vector.broadcast %27 : vector<2x8x1xf32> to vector<2x8x16xf32>
    %29 = arith.subf %5, %28 : vector<2x8x16xf32>
    %cst_18 = arith.constant 0.000000e+00 : f32
    %30 = vector.broadcast %cst_18 : f32 to vector<2x8x16xf32>
    %31 = arith.maximumf %29, %30 : vector<2x8x16xf32>
    %32 = arith.mulf %31, %31 : vector<2x8x16xf32>
    %cst_19 = arith.constant dense<0.000000e+00> : vector<2x8xf32>
    %33 = vector.multi_reduction <add>, %32, %cst_19 [2] : vector<2x8x16xf32> to vector<2x8xf32>
    %34 = vector.shape_cast %33 : vector<2x8xf32> to vector<2x8x1xf32>
    %cst_20 = arith.constant 1.000000e+00 : f32
    %35 = vector.broadcast %cst_20 : f32 to vector<2x8x1xf32>
    %36 = arith.subf %34, %35 : vector<2x8x1xf32>
    %cst_21 = arith.constant 0.000000e+00 : f32
    %37 = vector.broadcast %cst_21 : f32 to vector<2x8x1xf32>
    %38 = arith.cmpf oge, %36, %37 : vector<2x8x1xf32>
    %39 = arith.select %38, %27, %24 : vector<2x8x1xi1>, vector<2x8x1xf32>
    %c2_i32 = arith.constant 2 : i32
    %cst_22 = arith.constant 5.000000e-01 : f32
    %40 = arith.mulf %25, %cst_22 : f32
    %41 = vector.broadcast %40 : f32 to vector<2x8x1xf32>
    %42 = arith.addf %39, %41 : vector<2x8x1xf32>
    %43 = vector.broadcast %42 : vector<2x8x1xf32> to vector<2x8x16xf32>
    %44 = arith.subf %5, %43 : vector<2x8x16xf32>
    %cst_23 = arith.constant 0.000000e+00 : f32
    %45 = vector.broadcast %cst_23 : f32 to vector<2x8x16xf32>
    %46 = arith.maximumf %44, %45 : vector<2x8x16xf32>
    %47 = arith.mulf %46, %46 : vector<2x8x16xf32>
    %cst_24 = arith.constant dense<0.000000e+00> : vector<2x8xf32>
    %48 = vector.multi_reduction <add>, %47, %cst_24 [2] : vector<2x8x16xf32> to vector<2x8xf32>
    %49 = vector.shape_cast %48 : vector<2x8xf32> to vector<2x8x1xf32>
    %cst_25 = arith.constant 1.000000e+00 : f32
    %50 = vector.broadcast %cst_25 : f32 to vector<2x8x1xf32>
    %51 = arith.subf %49, %50 : vector<2x8x1xf32>
    %cst_26 = arith.constant 0.000000e+00 : f32
    %52 = vector.broadcast %cst_26 : f32 to vector<2x8x1xf32>
    %53 = arith.cmpf oge, %51, %52 : vector<2x8x1xf32>
    %54 = arith.select %53, %42, %39 : vector<2x8x1xi1>, vector<2x8x1xf32>
    %c3_i32 = arith.constant 3 : i32
    %cst_27 = arith.constant 5.000000e-01 : f32
    %55 = arith.mulf %40, %cst_27 : f32
    %56 = vector.broadcast %55 : f32 to vector<2x8x1xf32>
    %57 = arith.addf %54, %56 : vector<2x8x1xf32>
    %58 = vector.broadcast %57 : vector<2x8x1xf32> to vector<2x8x16xf32>
    %59 = arith.subf %5, %58 : vector<2x8x16xf32>
    %cst_28 = arith.constant 0.000000e+00 : f32
    %60 = vector.broadcast %cst_28 : f32 to vector<2x8x16xf32>
    %61 = arith.maximumf %59, %60 : vector<2x8x16xf32>
    %62 = arith.mulf %61, %61 : vector<2x8x16xf32>
    %cst_29 = arith.constant dense<0.000000e+00> : vector<2x8xf32>
    %63 = vector.multi_reduction <add>, %62, %cst_29 [2] : vector<2x8x16xf32> to vector<2x8xf32>
    %64 = vector.shape_cast %63 : vector<2x8xf32> to vector<2x8x1xf32>
    %cst_30 = arith.constant 1.000000e+00 : f32
    %65 = vector.broadcast %cst_30 : f32 to vector<2x8x1xf32>
    %66 = arith.subf %64, %65 : vector<2x8x1xf32>
    %cst_31 = arith.constant 0.000000e+00 : f32
    %67 = vector.broadcast %cst_31 : f32 to vector<2x8x1xf32>
    %68 = arith.cmpf oge, %66, %67 : vector<2x8x1xf32>
    %69 = arith.select %68, %57, %54 : vector<2x8x1xi1>, vector<2x8x1xf32>
    %c4_i32 = arith.constant 4 : i32
    %cst_32 = arith.constant 5.000000e-01 : f32
    %70 = arith.mulf %55, %cst_32 : f32
    %71 = vector.broadcast %70 : f32 to vector<2x8x1xf32>
    %72 = arith.addf %69, %71 : vector<2x8x1xf32>
    %73 = vector.broadcast %72 : vector<2x8x1xf32> to vector<2x8x16xf32>
    %74 = arith.subf %5, %73 : vector<2x8x16xf32>
    %cst_33 = arith.constant 0.000000e+00 : f32
    %75 = vector.broadcast %cst_33 : f32 to vector<2x8x16xf32>
    %76 = arith.maximumf %74, %75 : vector<2x8x16xf32>
    %77 = arith.mulf %76, %76 : vector<2x8x16xf32>
    %cst_34 = arith.constant dense<0.000000e+00> : vector<2x8xf32>
    %78 = vector.multi_reduction <add>, %77, %cst_34 [2] : vector<2x8x16xf32> to vector<2x8xf32>
    %79 = vector.shape_cast %78 : vector<2x8xf32> to vector<2x8x1xf32>
    %cst_35 = arith.constant 1.000000e+00 : f32
    %80 = vector.broadcast %cst_35 : f32 to vector<2x8x1xf32>
    %81 = arith.subf %79, %80 : vector<2x8x1xf32>
    %cst_36 = arith.constant 0.000000e+00 : f32
    %82 = vector.broadcast %cst_36 : f32 to vector<2x8x1xf32>
    %83 = arith.cmpf oge, %81, %82 : vector<2x8x1xf32>
    %84 = arith.select %83, %72, %69 : vector<2x8x1xi1>, vector<2x8x1xf32>
    %c5_i32 = arith.constant 5 : i32
    %cst_37 = arith.constant 5.000000e-01 : f32
    %85 = arith.mulf %70, %cst_37 : f32
    %86 = vector.broadcast %85 : f32 to vector<2x8x1xf32>
    %87 = arith.addf %84, %86 : vector<2x8x1xf32>
    %88 = vector.broadcast %87 : vector<2x8x1xf32> to vector<2x8x16xf32>
    %89 = arith.subf %5, %88 : vector<2x8x16xf32>
    %cst_38 = arith.constant 0.000000e+00 : f32
    %90 = vector.broadcast %cst_38 : f32 to vector<2x8x16xf32>
    %91 = arith.maximumf %89, %90 : vector<2x8x16xf32>
    %92 = arith.mulf %91, %91 : vector<2x8x16xf32>
    %cst_39 = arith.constant dense<0.000000e+00> : vector<2x8xf32>
    %93 = vector.multi_reduction <add>, %92, %cst_39 [2] : vector<2x8x16xf32> to vector<2x8xf32>
    %94 = vector.shape_cast %93 : vector<2x8xf32> to vector<2x8x1xf32>
    %cst_40 = arith.constant 1.000000e+00 : f32
    %95 = vector.broadcast %cst_40 : f32 to vector<2x8x1xf32>
    %96 = arith.subf %94, %95 : vector<2x8x1xf32>
    %cst_41 = arith.constant 0.000000e+00 : f32
    %97 = vector.broadcast %cst_41 : f32 to vector<2x8x1xf32>
    %98 = arith.cmpf oge, %96, %97 : vector<2x8x1xf32>
    %99 = arith.select %98, %87, %84 : vector<2x8x1xi1>, vector<2x8x1xf32>
    %c6_i32 = arith.constant 6 : i32
    %cst_42 = arith.constant 5.000000e-01 : f32
    %100 = arith.mulf %85, %cst_42 : f32
    %101 = vector.broadcast %100 : f32 to vector<2x8x1xf32>
    %102 = arith.addf %99, %101 : vector<2x8x1xf32>
    %103 = vector.broadcast %102 : vector<2x8x1xf32> to vector<2x8x16xf32>
    %104 = arith.subf %5, %103 : vector<2x8x16xf32>
    %cst_43 = arith.constant 0.000000e+00 : f32
    %105 = vector.broadcast %cst_43 : f32 to vector<2x8x16xf32>
    %106 = arith.maximumf %104, %105 : vector<2x8x16xf32>
    %107 = arith.mulf %106, %106 : vector<2x8x16xf32>
    %cst_44 = arith.constant dense<0.000000e+00> : vector<2x8xf32>
    %108 = vector.multi_reduction <add>, %107, %cst_44 [2] : vector<2x8x16xf32> to vector<2x8xf32>
    %109 = vector.shape_cast %108 : vector<2x8xf32> to vector<2x8x1xf32>
    %cst_45 = arith.constant 1.000000e+00 : f32
    %110 = vector.broadcast %cst_45 : f32 to vector<2x8x1xf32>
    %111 = arith.subf %109, %110 : vector<2x8x1xf32>
    %cst_46 = arith.constant 0.000000e+00 : f32
    %112 = vector.broadcast %cst_46 : f32 to vector<2x8x1xf32>
    %113 = arith.cmpf oge, %111, %112 : vector<2x8x1xf32>
    %114 = arith.select %113, %102, %99 : vector<2x8x1xi1>, vector<2x8x1xf32>
    %c7_i32 = arith.constant 7 : i32
    %cst_47 = arith.constant 5.000000e-01 : f32
    %115 = arith.mulf %100, %cst_47 : f32
    %116 = vector.broadcast %115 : f32 to vector<2x8x1xf32>
    %117 = arith.addf %114, %116 : vector<2x8x1xf32>
    %118 = vector.broadcast %117 : vector<2x8x1xf32> to vector<2x8x16xf32>
    %119 = arith.subf %5, %118 : vector<2x8x16xf32>
    %cst_48 = arith.constant 0.000000e+00 : f32
    %120 = vector.broadcast %cst_48 : f32 to vector<2x8x16xf32>
    %121 = arith.maximumf %119, %120 : vector<2x8x16xf32>
    %122 = arith.mulf %121, %121 : vector<2x8x16xf32>
    %cst_49 = arith.constant dense<0.000000e+00> : vector<2x8xf32>
    %123 = vector.multi_reduction <add>, %122, %cst_49 [2] : vector<2x8x16xf32> to vector<2x8xf32>
    %124 = vector.shape_cast %123 : vector<2x8xf32> to vector<2x8x1xf32>
    %cst_50 = arith.constant 1.000000e+00 : f32
    %125 = vector.broadcast %cst_50 : f32 to vector<2x8x1xf32>
    %126 = arith.subf %124, %125 : vector<2x8x1xf32>
    %cst_51 = arith.constant 0.000000e+00 : f32
    %127 = vector.broadcast %cst_51 : f32 to vector<2x8x1xf32>
    %128 = arith.cmpf oge, %126, %127 : vector<2x8x1xf32>
    %129 = arith.select %128, %117, %114 : vector<2x8x1xi1>, vector<2x8x1xf32>
    %130 = vector.broadcast %129 : vector<2x8x1xf32> to vector<2x8x16xf32>
    %131 = arith.subf %5, %130 : vector<2x8x16xf32>
    %cst_52 = arith.constant 0.000000e+00 : f32
    %132 = vector.broadcast %cst_52 : f32 to vector<2x8x16xf32>
    %133 = arith.maximumf %131, %132 : vector<2x8x16xf32>
    %134 = arith.mulf %133, %133 : vector<2x8x16xf32>
    %cst_53 = arith.constant dense<0.000000e+00> : vector<2x8xf32>
    %135 = vector.multi_reduction <add>, %134, %cst_53 [2] : vector<2x8x16xf32> to vector<2x8xf32>
    %136 = vector.shape_cast %135 : vector<2x8xf32> to vector<2x8x1xf32>
    %cst_54 = arith.constant 1.000000e+00 : f32
    %137 = vector.broadcast %cst_54 : f32 to vector<2x8x1xf32>
    %138 = arith.subf %136, %137 : vector<2x8x1xf32>
    %cst_55 = arith.constant dense<0.000000e+00> : vector<2x8xf32>
    %139 = vector.multi_reduction <add>, %133, %cst_55 [2] : vector<2x8x16xf32> to vector<2x8xf32>
    %140 = vector.shape_cast %139 : vector<2x8xf32> to vector<2x8x1xf32>
    %cst_56 = arith.constant 1.000000e-30 : f32
    %141 = vector.broadcast %cst_56 : f32 to vector<2x8x1xf32>
    %142 = arith.maximumf %140, %141 : vector<2x8x1xf32>
    %cst_57 = arith.constant 5.000000e-01 : f32
    %143 = vector.broadcast %cst_57 : f32 to vector<2x8x1xf32>
    %144 = arith.mulf %143, %138 : vector<2x8x1xf32>
    %145 = tpu.reciprocal %142 {approx = true} : vector<2x8x1xf32> -> vector<2x8x1xf32>
    %146 = arith.mulf %144, %145 : vector<2x8x1xf32>
    %147 = arith.addf %129, %146 : vector<2x8x1xf32>
    %148 = vector.broadcast %147 : vector<2x8x1xf32> to vector<2x8x16xf32>
    %149 = arith.subf %5, %148 : vector<2x8x16xf32>
    %cst_58 = arith.constant 0.000000e+00 : f32
    %150 = vector.broadcast %cst_58 : f32 to vector<2x8x16xf32>
    %151 = arith.maximumf %149, %150 : vector<2x8x16xf32>
    %152 = arith.mulf %151, %151 : vector<2x8x16xf32>
    %cst_59 = arith.constant dense<0.000000e+00> : vector<2x8xf32>
    %153 = vector.multi_reduction <add>, %152, %cst_59 [2] : vector<2x8x16xf32> to vector<2x8xf32>
    %154 = vector.shape_cast %153 : vector<2x8xf32> to vector<2x8x1xf32>
    %cst_60 = arith.constant 1.000000e+00 : f32
    %155 = vector.broadcast %cst_60 : f32 to vector<2x8x1xf32>
    %156 = arith.subf %154, %155 : vector<2x8x1xf32>
    %cst_61 = arith.constant dense<0.000000e+00> : vector<2x8xf32>
    %157 = vector.multi_reduction <add>, %151, %cst_61 [2] : vector<2x8x16xf32> to vector<2x8xf32>
    %158 = vector.shape_cast %157 : vector<2x8xf32> to vector<2x8x1xf32>
    %cst_62 = arith.constant 1.000000e-30 : f32
    %159 = vector.broadcast %cst_62 : f32 to vector<2x8x1xf32>
    %160 = arith.maximumf %158, %159 : vector<2x8x1xf32>
    %cst_63 = arith.constant 5.000000e-01 : f32
    %161 = vector.broadcast %cst_63 : f32 to vector<2x8x1xf32>
    %162 = arith.mulf %161, %156 : vector<2x8x1xf32>
    %163 = tpu.reciprocal %160 {approx = true} : vector<2x8x1xf32> -> vector<2x8x1xf32>
    %164 = arith.mulf %162, %163 : vector<2x8x1xf32>
    %165 = arith.addf %147, %164 : vector<2x8x1xf32>
    %166 = vector.broadcast %165 : vector<2x8x1xf32> to vector<2x8x16xf32>
    %167 = arith.subf %5, %166 : vector<2x8x16xf32>
    %cst_64 = arith.constant 0.000000e+00 : f32
    %168 = vector.broadcast %cst_64 : f32 to vector<2x8x16xf32>
    %169 = arith.maximumf %167, %168 : vector<2x8x16xf32>
    %170 = arith.mulf %169, %169 : vector<2x8x16xf32>
    %cst_65 = arith.constant dense<0.000000e+00> : vector<2x8xf32>
    %171 = vector.multi_reduction <add>, %170, %cst_65 [2] : vector<2x8x16xf32> to vector<2x8xf32>
    %172 = vector.shape_cast %171 : vector<2x8xf32> to vector<2x8x1xf32>
    %cst_66 = arith.constant dense<0.000000e+00> : vector<2x8x32xf32>
    %173 = tpu.matmul %170, %2, %cst_66 {dimension_numbers = #tpu.dot_dimension_numbers<[2], [1], [1], [2], [0, 0, 0, 1, 1, 2], [0], [0]>} : vector<2x8x16xf32>, vector<2x16x32xf32>, vector<2x8x32xf32> -> vector<2x8x32xf32>
    %174 = tpu.reciprocal %172 : vector<2x8x1xf32> -> vector<2x8x1xf32>
    %175 = vector.broadcast %174 : vector<2x8x1xf32> to vector<2x8x32xf32>
    %176 = arith.mulf %173, %175 : vector<2x8x32xf32>
    %c0_67 = arith.constant 0 : index
    %c0_68 = arith.constant 0 : index
    %c0_69 = arith.constant 0 : index
    %177 = vector.load %arg5[%c0_67, %c0_68, %c0_69] : memref<2x8x32xf32, #tpu.memory_space<vmem>>, vector<2x8x32xf32>
    tpu.vector_store %arg5[%c0_67, %c0_68, %c0_69], %176 {strides = array<i32>} : memref<2x8x32xf32, #tpu.memory_space<vmem>>, vector<2x8x32xf32>,
    return
  }
  func.func @transform_0(%arg0: i32, %arg1: i32) -> (i32, i32, i32) {
    %c0_i32 = arith.constant 0 : i32
    %c0_i32_0 = arith.constant 0 : i32
    return %arg0, %arg1, %c0_i32 : i32, i32, i32
  }
  func.func @transform_1(%arg0: i32, %arg1: i32) -> (i32, i32, i32) {
    %c0_i32 = arith.constant 0 : i32
    %c0_i32_0 = arith.constant 0 : i32
    %c0_i32_1 = arith.constant 0 : i32
    return %arg0, %c0_i32, %c0_i32_0 : i32, i32, i32
  }
  func.func @transform_2(%arg0: i32, %arg1: i32) -> (i32, i32, i32) {
    %c0_i32 = arith.constant 0 : i32
    %c0_i32_0 = arith.constant 0 : i32
    %c0_i32_1 = arith.constant 0 : i32
    return %arg0, %c0_i32, %c0_i32_0 : i32, i32, i32
  }
  func.func @transform_3(%arg0: i32, %arg1: i32) -> (i32, i32, i32) {
    %c0_i32 = arith.constant 0 : i32
    %c0_i32_0 = arith.constant 0 : i32
    return %arg0, %arg1, %c0_i32 : i32, i32, i32
  }
}

</mosaic_0001>

<llo_original>
// kernel: tpu_custom_call.1
$region0: #{tpu_custom_call.1}
  #allocation0 [shape = 'u32[]', space=smem, size = 0x4, offset = 0x4, fixed_abs, tag = 'smem constant byte address 0x4 - core index']
  #allocation1 [shape = 'u32[144,128]{1,0:T(1,128)}', space=vmem, size = 0x12000, scoped, tag = 'internal scratch']
  %s0 = inlined_call_operand.hbm [shape: f32[4,8,32], index: 0, kind: input, shape index: {}]
  %s1 = inlined_call_operand.hbm [shape: f32[4,16,32], index: 1, kind: input, shape index: {}]
  %s2 = inlined_call_operand.hbm [shape: f32[4,16,32], index: 2, kind: input, shape index: {}]
  %s3 = inlined_call_operand.hbm [shape: f32[4,8,32], index: 3, kind: output, shape index: {}]
  %s4 = sld [smem:[#allocation0]]
  $region57: #{tpu_custom_call.1} parent=0
    _
  %s6 = ssub.s32 1, %s4
  %s7 = scalar_select 0, %s6, %s4
  $region1: #{tpu_custom_call.1} parent=0
    #allocation2 [shape = 'u8[16384]{0}', space=vmem, size = 0x4000, scoped, tag = 'input window, operand 0']
    #allocation3 [shape = 's32[2]{0}', space=sflag, size = 0x8, scoped, tag = 'scoped memory for tpu_custom_call.1']
    #allocation4 [shape = 's32[2]{0}', space=sflag, size = 0x8, scoped, tag = 'scoped memory for tpu_custom_call.1']
    #allocation5 [shape = 'u8[32768]{0}', space=vmem, size = 0x8000, scoped, tag = 'input window, operand 1']
    #allocation6 [shape = 's32[2]{0}', space=sflag, size = 0x8, scoped, tag = 'scoped memory for tpu_custom_call.1']
    #allocation7 [shape = 'u8[32768]{0}', space=vmem, size = 0x8000, scoped, tag = 'input window, operand 2']
    #allocation8 [shape = 'u8[16384]{0}', space=vmem, size = 0x4000, scoped, tag = 'output window, operand 0']
    %8 = vsyncpa [#allocation3], 0
    %s9 = scalar_lea.sflag [#allocation3], 1
    %10 = vsyncpa %s9, 0
    %11 = vsyncpa [#allocation6], 0
    %s12 = scalar_lea.sflag [#allocation6], 1
    %13 = vsyncpa %s12, 0
    %14 = vsyncpa [#allocation4], 0
    %s15 = scalar_lea.sflag [#allocation4], 1
    %16 = vsyncpa %s15, 0
    loop: start=0, step=1, limit=4
    $region2: #{tpu_custom_call.1} parent=1 // loop_pre_header
      _
    $region3: #{tpu_custom_call.1} parent=1 // loop_header
      %s18 = sphi 0, %s22
      %p19 = scmp.ge.s32.totalorder %s18, 4
      %s25 = sphi 0, %s37
      %s26 = sphi 0, %s33
      %s27 = sphi 0, %s25
      %s28 = sphi 0, %s26
      %s29 = sphi 0, %s27
      %s30 = sphi 0, %s28
      %s42 = sphi 0, %s44
      %s45 = sphi 0, %s42
      %s46 = sphi 0, %s45
      %s62 = sphi 0, %s46
      %s68 = sphi 0, %s70
      %s71 = sphi 0, %s68
      %s72 = sphi 0, %s71
      %s88 = sphi 0, %s72
      %s94 = sphi 0, %s96
      %s97 = sphi 0, %s94
      %s98 = sphi 0, %s97
      %s114 = sphi 0, %s98
      %s122 = sphi 0, %s124
      %s125 = sphi 0, %s122
      %s126 = sphi 0, %s125
      %s142 = sphi 0, %s126
    $region4: #{tpu_custom_call.1} parent=1 // loop_header_branch
      %21 = sbr.rel (%p19) target = $region8
    $region5: #{tpu_custom_call.1} parent=1 // loop_body
      %s23 = ssub.s32 %s18, 1
      %s24 = ssub.s32 %s18, 2
      %s31 = sadd.s32 1, %s26
      %p32 = scmp.ge.s32.totalorder %s31, 1
      %s33 = scalar_select %p32, 0, %s31
      %s34 = sadd.s32 1, %s25
      %s35 = scalar_select %p32, %s34, %s25
      %p36 = scmp.ge.s32.totalorder %s35, 2
      %s37 = scalar_select %p36, 0, %s35
      %s38 = ssub.s32 %s25, %s37
      %s39 = ssub.s32 %s26, %s33
      %s40 = sor.u32 %s38, %s39
      %p41 = scmp.eq.s32.totalorder %s40, 0
      %s43 = sadd.s32 %s42, 1
      %s44 = scalar_select %p41, %s42, %s43
      %p47 = pneg %p41
      %p48 = scmp.eq.s32.totalorder %s18, 1
      %p49 = por %p47, %p48
      %p50 = scmp.ne.s32.totalorder %s42, %s45
      %p51 = scmp.eq.s32.totalorder %s18, 0
      %p52 = por %p50, %p51
      %p53 = scmp.ne.s32.totalorder %s42, %s45
      %p54 = scmp.eq.s32.totalorder %s23, 1
      %p55 = por %p53, %p54
      %p56 = scmp.ne.s32.totalorder %s45, %s46
      %p57 = scmp.eq.s32.totalorder %s23, 0
      %p58 = por %p56, %p57
      %p59 = scmp.ne.s32.totalorder %s45, %s46
      %p60 = scmp.eq.s32.totalorder %s24, 1
      %p61 = por %p59, %p60
      %p63 = scmp.ne.s32.totalorder %s46, %s62
      %p64 = scmp.eq.s32.totalorder %s24, 0
      %p65 = por %p63, %p64
      %s66 = ssub.s32 %s25, %s37
      %p67 = scmp.eq.s32.totalorder %s66, 0
      %s69 = sadd.s32 %s68, 1
      %s70 = scalar_select %p67, %s68, %s69
      %p73 = pneg %p67
      %p74 = scmp.eq.s32.totalorder %s18, 1
      %p75 = por %p73, %p74
      %p76 = scmp.ne.s32.totalorder %s68, %s71
      %p77 = scmp.eq.s32.totalorder %s18, 0
      %p78 = por %p76, %p77
      %p79 = scmp.ne.s32.totalorder %s68, %s71
      %p80 = scmp.eq.s32.totalorder %s23, 1
      %p81 = por %p79, %p80
      %p82 = scmp.ne.s32.totalorder %s71, %s72
      %p83 = scmp.eq.s32.totalorder %s23, 0
      %p84 = por %p82, %p83
      %p85 = scmp.ne.s32.totalorder %s71, %s72
      %p86 = scmp.eq.s32.totalorder %s24, 1
      %p87 = por %p85, %p86
      %p89 = scmp.ne.s32.totalorder %s72, %s88
      %p90 = scmp.eq.s32.totalorder %s24, 0
      %p91 = por %p89, %p90
      %s92 = ssub.s32 %s25, %s37
      %p93 = scmp.eq.s32.totalorder %s92, 0
      %s95 = sadd.s32 %s94, 1
      %s96 = scalar_select %p93, %s94, %s95
      %p99 = pneg %p93
      %p100 = scmp.eq.s32.totalorder %s18, 1
      %p101 = por %p99, %p100
      %p102 = scmp.ne.s32.totalorder %s94, %s97
      %p103 = scmp.eq.s32.totalorder %s18, 0
      %p104 = por %p102, %p103
      %p105 = scmp.ne.s32.totalorder %s94, %s97
      %p106 = scmp.eq.s32.totalorder %s23, 1
      %p107 = por %p105, %p106
      %p108 = scmp.ne.s32.totalorder %s97, %s98
      %p109 = scmp.eq.s32.totalorder %s23, 0
      %p110 = por %p108, %p109
      %p111 = scmp.ne.s32.totalorder %s97, %s98
      %p112 = scmp.eq.s32.totalorder %s24, 1
      %p113 = por %p111, %p112
      %p115 = scmp.ne.s32.totalorder %s98, %s114
      %p116 = scmp.eq.s32.totalorder %s24, 0
      %p117 = por %p115, %p116
      %s118 = ssub.s32 %s25, %s37
      %s119 = ssub.s32 %s26, %s33
      %s120 = sor.u32 %s118, %s119
      %p121 = scmp.eq.s32.totalorder %s120, 0
      %s123 = sadd.s32 %s122, 1
      %s124 = scalar_select %p121, %s122, %s123
      %p127 = pneg %p121
      %p128 = scmp.eq.s32.totalorder %s18, 1
      %p129 = por %p127, %p128
      %p130 = scmp.ne.s32.totalorder %s122, %s125
      %p131 = scmp.eq.s32.totalorder %s18, 0
      %p132 = por %p130, %p131
      %p133 = scmp.ne.s32.totalorder %s122, %s125
      %p134 = scmp.eq.s32.totalorder %s23, 1
      %p135 = por %p133, %p134
      %p136 = scmp.ne.s32.totalorder %s125, %s126
      %p137 = scmp.eq.s32.totalorder %s23, 0
      %p138 = por %p136, %p137
      %p139 = scmp.ne.s32.totalorder %s125, %s126
      %p140 = scmp.eq.s32.totalorder %s24, 1
      %p141 = por %p139, %p140
      %p143 = scmp.ne.s32.totalorder %s126, %s142
      %p144 = scmp.eq.s32.totalorder %s24, 0
      %p145 = por %p143, %p144
      %p146 = scmp.le.s32.totalorder 1, %s18
      %p147 = scmp.lt.s32.totalorder %s18, 3
      %p148 = pnand %p146, %p147
      %p149 = pneg %p148
      // Predicated region
      $region9: #{tpu_custom_call.1} parent=5 // pred_check
        _
      $region10: #{tpu_custom_call.1} parent=5 // pred_check_branch
        %151 = sbr.rel (%p148) target = $region12
      $region11: #{tpu_custom_call.1} parent=5 // pred_region
        %s152 = ssub.s32 %s18, 1
      $region12: #{tpu_custom_call.1} parent=5 // pred_fallthru
        _
      %p153 = scmp.lt.s32.totalorder %s18, 2
      // Predicated region
      $region13: #{tpu_custom_call.1} parent=5 // pred_check
        %p154 = pneg %p153
      $region14: #{tpu_custom_call.1} parent=5 // pred_check_branch
        %156 = sbr.rel (%p154) target = $region16
      $region15: #{tpu_custom_call.1} parent=5 // pred_region
        // Predicated region
        $region17: #{tpu_custom_call.1} parent=15 // pred_check
          %p157 = pneg %p52
        $region18: #{tpu_custom_call.1} parent=15 // pred_check_branch
          %159 = sbr.rel (%p157) target = $region20
        $region19: #{tpu_custom_call.1} parent=15 // pred_region
          %s160 = sand.u32 %s42, 1
          %s161 = scalar_lea.sflag [#allocation3], %s160
          %s162 = sand.u32 %s42, 1
          %s163 = smul.addr %s162, 16
          %s164 = scalar_lea.vmem [#allocation2], %s163
          %s165 = smul.u32 2, %s25
          %s167 = ssub.s32 256, 256
          %168 = vsyncadd %s161, %s167
          %s169 = sadd.s32 %s26, %s165
          %s170 = smul.addr %s169, 128
          %s171 = scalar_lea.hbm %s0, %s170
          %s172 = sshll.u32 %s164, 4
          %s173 = int_to_ptr.vmem [resolvable:$true] %s172
          %178 = dma.hbm_to_vmem [thread:$0]  %s171, 256, %s173, %s161, 128, 128, 8
        $region20: #{tpu_custom_call.1} parent=15 // pred_fallthru
          _
        // Predicated region
        $region21: #{tpu_custom_call.1} parent=15 // pred_check
          %p179 = pneg %p78
        $region22: #{tpu_custom_call.1} parent=15 // pred_check_branch
          %181 = sbr.rel (%p179) target = $region24
        $region23: #{tpu_custom_call.1} parent=15 // pred_region
          %s182 = sand.u32 %s18, 1
          %s183 = scalar_lea.sflag [#allocation6], %s182
          %s184 = sand.u32 %s68, 1
          %s185 = smul.addr %s184, 32
          %s186 = scalar_lea.vmem [#allocation5], %s185
          %s187 = smul.u32 2, %s25
          %s189 = ssub.s32 512, 512
          %190 = vsyncadd %s183, %s189
          %s191 = smul.addr %s187, 2
          %s192 = smul.addr %s191, 128
          %s193 = scalar_lea.hbm %s1, %s192
          %s194 = sshll.u32 %s186, 4
          %s195 = int_to_ptr.vmem [resolvable:$true] %s194
          %200 = dma.hbm_to_vmem [thread:$0]  %s193, 512, %s195, %s183, 128, 128, 8
        $region24: #{tpu_custom_call.1} parent=15 // pred_fallthru
          _
        // Predicated region
        $region25: #{tpu_custom_call.1} parent=15 // pred_check
          %p201 = pneg %p104
        $region26: #{tpu_custom_call.1} parent=15 // pred_check_branch
          %203 = sbr.rel (%p201) target = $region28
        $region27: #{tpu_custom_call.1} parent=15 // pred_region
          %s204 = sand.u32 %s18, 1
          %s205 = scalar_lea.sflag [#allocation6], %s204
          %s206 = sand.u32 %s94, 1
          %s207 = smul.addr %s206, 32
          %s208 = scalar_lea.vmem [#allocation7], %s207
          %s209 = smul.u32 2, %s25
          %s211 = ssub.s32 512, 512
          %212 = vsyncadd %s205, %s211
          %s213 = smul.addr %s209, 2
          %s214 = smul.addr %s213, 128
          %s215 = scalar_lea.hbm %s2, %s214
          %s216 = sshll.u32 %s208, 4
          %s217 = int_to_ptr.vmem [resolvable:$true] %s216
          %222 = dma.hbm_to_vmem [thread:$0]  %s215, 512, %s217, %s205, 128, 128, 8
        $region28: #{tpu_custom_call.1} parent=15 // pred_fallthru
          _
      $region16: #{tpu_custom_call.1} parent=5 // pred_fallthru
        _
      %p223 = scmp.le.s32.totalorder 1, %s18
      %p224 = scmp.lt.s32.totalorder %s18, 3
      %p225 = pnand %p223, %p224
      %p226 = pneg %p225
      // Predicated region
      $region29: #{tpu_custom_call.1} parent=5 // pred_check
        _
      $region30: #{tpu_custom_call.1} parent=5 // pred_check_branch
        %228 = sbr.rel (%p225) target = $region32
      $region31: #{tpu_custom_call.1} parent=5 // pred_region
        %s229 = ssub.s32 %s18, 1
        %s230 = sand.u32 %s45, 1
        %s231 = scalar_lea.sflag [#allocation3], %s230
        %s232 = sand.u32 %s45, 1
        %s233 = smul.addr %s232, 16
        %s234 = scalar_lea.vmem [#allocation2], %s233
        // Predicated region
        $region33: #{tpu_custom_call.1} parent=31 // pred_check
          %p235 = pneg %p58
        $region34: #{tpu_custom_call.1} parent=31 // pred_check_branch
          %237 = sbr.rel (%p235) target = $region36
        $region35: #{tpu_custom_call.1} parent=31 // pred_region
          %238 = dma.done %s231, 256
        $region36: #{tpu_custom_call.1} parent=31 // pred_fallthru
          _
        %s239 = sand.u32 %s23, 1
        %s240 = scalar_lea.sflag [#allocation6], %s239
        %s241 = sand.u32 %s71, 1
        %s242 = smul.addr %s241, 32
        %s243 = scalar_lea.vmem [#allocation5], %s242
        // Predicated region
        $region37: #{tpu_custom_call.1} parent=31 // pred_check
          %p244 = pneg %p84
        $region38: #{tpu_custom_call.1} parent=31 // pred_check_branch
          %246 = sbr.rel (%p244) target = $region40
        $region39: #{tpu_custom_call.1} parent=31 // pred_region
          %247 = dma.done %s240, 512
        $region40: #{tpu_custom_call.1} parent=31 // pred_fallthru
          _
        %s248 = sand.u32 %s23, 1
        %s249 = scalar_lea.sflag [#allocation6], %s248
        %s250 = sand.u32 %s97, 1
        %s251 = smul.addr %s250, 32
        %s252 = scalar_lea.vmem [#allocation7], %s251
        // Predicated region
        $region41: #{tpu_custom_call.1} parent=31 // pred_check
          %p253 = pneg %p110
        $region42: #{tpu_custom_call.1} parent=31 // pred_check_branch
          %255 = sbr.rel (%p253) target = $region44
        $region43: #{tpu_custom_call.1} parent=31 // pred_region
          %256 = dma.done %s249, 512
        $region44: #{tpu_custom_call.1} parent=31 // pred_fallthru
          _
        %s257 = sand.u32 %s45, 1
        %s258 = scalar_lea.sflag [#allocation3], %s257
        %s259 = sand.u32 %s45, 1
        %s260 = smul.addr %s259, 16
        %s261 = scalar_lea.vmem [#allocation2], %s260
        %p262 = pneg %p58
        %p263 = pneg %p55
        %s264 = sand.u32 %s23, 1
        %s265 = scalar_lea.sflag [#allocation6], %s264
        %s266 = sand.u32 %s71, 1
        %s267 = smul.addr %s266, 32
        %s268 = scalar_lea.vmem [#allocation5], %s267
        %p269 = pneg %p84
        %p270 = pneg %p81
        %s271 = sand.u32 %s23, 1
        %s272 = scalar_lea.sflag [#allocation6], %s271
        %s273 = sand.u32 %s97, 1
        %s274 = smul.addr %s273, 32
        %s275 = scalar_lea.vmem [#allocation7], %s274
        %p276 = pneg %p110
        %p277 = pneg %p107
        %p278 = pneg %p138
        %p279 = pneg %p135
        %s280 = sand.u32 %s125, 1
        %s281 = scalar_lea.sflag [#allocation4], %s280
        %s282 = sand.u32 %s125, 1
        %s283 = smul.addr %s282, 16
        %s284 = scalar_lea.vmem [#allocation8], %s283
        %s285 = smul.u32 2, %s27
        %s286 = smul.u32 2, %s27
        %s287 = smul.u32 2, %s27
        %s288 = smul.u32 2, %s27
        %v289 = vld [vmem:[%s234] sm:$0xff]
        %v290 = vld [vmem:[%s234 + $0x8] sm:$0xff]
        %v291 = vld [vmem:[%s243] sm:$0xff]
        %v292 = vld [vmem:[%s243 + $0x8] sm:$0xff]
        %v293 = vld [vmem:[%s243 + $0x10] sm:$0xff]
        %v294 = vld [vmem:[%s243 + $0x18] sm:$0xff]
        %v295 = vld [vmem:[%s252] sm:$0xff]
        %v296 = vld [vmem:[%s252 + $0x8] sm:$0xff]
        %v297 = vld [vmem:[%s252 + $0x10] sm:$0xff]
        %v298 = vld [vmem:[%s252 + $0x18] sm:$0xff]
        %v299 = vmul.f32 %v289, 0.088388346
        %v300 = vmul.f32 %v290, 0.088388346
        %vm301 = vcmask 261120
        %v303 = vsel %vm301, %v299, 0
        %v306 = vsel %vm301, %v291, 0
        %v309 = vsel %vm301, %v292, 0
        %311 = vmatprep.subr.mxu0 0.0
        %312 = vmatpush1.xpose.msra.mxu0 %v306
        %313 = vmatprep.subr.mxu0 0.0
        %314 = vmatpush1.xpose.msra.mxu0 %v309
        %315 = vmatprep.subr.mxu0 0.0
        %316 = vmatpush1.xpose.msra.mxu0 0.0
        %317 = vmatprep.subr.mxu0 0.0
        %318 = vmatpush1.xpose.msra.mxu0 0.0
        %319 = vmatprep.subr.mxu0 0.0
        %320 = vmatpush1.xpose.msra.mxu0 0.0
        %321 = vmatprep.subr.mxu0 0.0
        %322 = vmatpush1.xpose.msra.mxu0 0.0
        %323 = vmatprep.subr.mxu0 0.0
        %324 = vmatpush1.xpose.msra.mxu0 0.0
        %325 = vmatprep.subr.mxu0 0.0
        %326 = vmatpush1.xpose.msra.mxu0 0.0
        %327 = vmatprep.subr.mxu0 0.0
        %328 = vmatpush1.xpose.msra.mxu0 0.0
        %329 = vmatprep.subr.mxu0 0.0
        %330 = vmatpush1.xpose.msra.mxu0 0.0
        %331 = vmatprep.subr.mxu0 0.0
        %332 = vmatpush1.xpose.msra.mxu0 0.0
        %333 = vmatprep.subr.mxu0 0.0
        %334 = vmatpush1.xpose.msra.mxu0 0.0
        %335 = vmatprep.subr.mxu0 0.0
        %336 = vmatpush1.xpose.msra.mxu0 0.0
        %337 = vmatprep.subr.mxu0 0.0
        %338 = vmatpush1.xpose.msra.mxu0 0.0
        %339 = vmatprep.subr.mxu0 0.0
        %340 = vmatpush1.xpose.msra.mxu0 0.0
        %341 = vmatprep.subr.mxu0 0.0
        %342 = vmatpush1.xpose.msra.mxu0 0.0
        %343 = vmatprep.subr.mxu0 0.0
        %344 = vmatpush1.xpose.msra.mxu0 0.0
        %345 = vmatprep.subr.mxu0 0.0
        %346 = vmatpush1.xpose.msra.mxu0 0.0
        %347 = vmatprep.subr.mxu0 0.0
        %348 = vmatpush1.xpose.msra.mxu0 0.0
        %349 = vmatprep.subr.mxu0 0.0
        %350 = vmatpush1.xpose.msra.mxu0 0.0
        %351 = vmatprep.subr.mxu0 0.0
        %352 = vmatpush1.xpose.msra.mxu0 0.0
        %353 = vmatprep.subr.mxu0 0.0
        %354 = vmatpush1.xpose.msra.mxu0 0.0
        %355 = vmatprep.subr.mxu0 0.0
        %356 = vmatpush1.xpose.msra.mxu0 0.0
        %357 = vmatprep.subr.mxu0 0.0
        %358 = vmatpush1.xpose.msra.mxu0 0.0
        %359 = vmatprep.subr.mxu0 0.0
        %360 = vmatpush1.xpose.msra.mxu0 0.0
        %361 = vmatprep.subr.mxu0 0.0
        %362 = vmatpush1.xpose.msra.mxu0 0.0
        %363 = vmatprep.subr.mxu0 0.0
        %364 = vmatpush1.xpose.msra.mxu0 0.0
        %365 = vmatprep.subr.mxu0 0.0
        %366 = vmatpush1.xpose.msra.mxu0 0.0
        %367 = vmatprep.subr.mxu0 0.0
        %368 = vmatpush1.xpose.msra.mxu0 0.0
        %369 = vmatprep.subr.mxu0 0.0
        %370 = vmatpush1.xpose.msra.mxu0 0.0
        %371 = vmatprep.subr.mxu0 0.0
        %372 = vmatpush1.xpose.msra.mxu0 0.0
        %373 = vmatprep.subr.mxu0 0.0
        %374 = vmatpush1.xpose.msra.mxu0 0.0
        %375 = vmatprep.mubr.f32.mxu0 0.0
        %376 = vmatmul.mubr.f32.gmra.mrb[0].mxu0 %v303
        %v377 = vpop.f32.mrb[0].mxu0
        %v378 = vadd.f32 0.0, %v377
        %v379 = vpop.f32.mrb[0].mxu0
        %380 = vdwg.mxu0
        %v382 = vsel %vm301, %v300, 0
        %v385 = vsel %vm301, %v293, 0
        %v388 = vsel %vm301, %v294, 0
        %390 = vmatprep.subr.mxu0 0.0
        %391 = vmatpush1.xpose.msra.mxu0 %v385
        %392 = vmatprep.subr.mxu0 0.0
        %393 = vmatpush1.xpose.msra.mxu0 %v388
        %394 = vmatprep.subr.mxu0 0.0
        %395 = vmatpush1.xpose.msra.mxu0 0.0
        %396 = vmatprep.subr.mxu0 0.0
        %397 = vmatpush1.xpose.msra.mxu0 0.0
        %398 = vmatprep.subr.mxu0 0.0
        %399 = vmatpush1.xpose.msra.mxu0 0.0
        %400 = vmatprep.subr.mxu0 0.0
        %401 = vmatpush1.xpose.msra.mxu0 0.0
        %402 = vmatprep.subr.mxu0 0.0
        %403 = vmatpush1.xpose.msra.mxu0 0.0
        %404 = vmatprep.subr.mxu0 0.0
        %405 = vmatpush1.xpose.msra.mxu0 0.0
        %406 = vmatprep.subr.mxu0 0.0
        %407 = vmatpush1.xpose.msra.mxu0 0.0
        %408 = vmatprep.subr.mxu0 0.0
        %409 = vmatpush1.xpose.msra.mxu0 0.0
        %410 = vmatprep.subr.mxu0 0.0
        %411 = vmatpush1.xpose.msra.mxu0 0.0
        %412 = vmatprep.subr.mxu0 0.0
        %413 = vmatpush1.xpose.msra.mxu0 0.0
        %414 = vmatprep.subr.mxu0 0.0
        %415 = vmatpush1.xpose.msra.mxu0 0.0
        %416 = vmatprep.subr.mxu0 0.0
        %417 = vmatpush1.xpose.msra.mxu0 0.0
        %418 = vmatprep.subr.mxu0 0.0
        %419 = vmatpush1.xpose.msra.mxu0 0.0
        %420 = vmatprep.subr.mxu0 0.0
        %421 = vmatpush1.xpose.msra.mxu0 0.0
        %422 = vmatprep.subr.mxu0 0.0
        %423 = vmatpush1.xpose.msra.mxu0 0.0
        %424 = vmatprep.subr.mxu0 0.0
        %425 = vmatpush1.xpose.msra.mxu0 0.0
        %426 = vmatprep.subr.mxu0 0.0
        %427 = vmatpush1.xpose.msra.mxu0 0.0
        %428 = vmatprep.subr.mxu0 0.0
        %429 = vmatpush1.xpose.msra.mxu0 0.0
        %430 = vmatprep.subr.mxu0 0.0
        %431 = vmatpush1.xpose.msra.mxu0 0.0
        %432 = vmatprep.subr.mxu0 0.0
        %433 = vmatpush1.xpose.msra.mxu0 0.0
        %434 = vmatprep.subr.mxu0 0.0
        %435 = vmatpush1.xpose.msra.mxu0 0.0
        %436 = vmatprep.subr.mxu0 0.0
        %437 = vmatpush1.xpose.msra.mxu0 0.0
        %438 = vmatprep.subr.mxu0 0.0
        %439 = vmatpush1.xpose.msra.mxu0 0.0
        %440 = vmatprep.subr.mxu0 0.0
        %441 = vmatpush1.xpose.msra.mxu0 0.0
        %442 = vmatprep.subr.mxu0 0.0
        %443 = vmatpush1.xpose.msra.mxu0 0.0
        %444 = vmatprep.subr.mxu0 0.0
        %445 = vmatpush1.xpose.msra.mxu0 0.0
        %446 = vmatprep.subr.mxu0 0.0
        %447 = vmatpush1.xpose.msra.mxu0 0.0
        %448 = vmatprep.subr.mxu0 0.0
        %449 = vmatpush1.xpose.msra.mxu0 0.0
        %450 = vmatprep.subr.mxu0 0.0
        %451 = vmatpush1.xpose.msra.mxu0 0.0
        %452 = vmatprep.subr.mxu0 0.0
        %453 = vmatpush1.xpose.msra.mxu0 0.0
        %454 = vmatprep.mubr.f32.mxu0 0.0
        %455 = vmatmul.mubr.f32.gmra.mrb[0].mxu0 %v382
        %v456 = vpop.f32.mrb[0].mxu0
        %v457 = vadd.f32 0.0, %v456
        %v458 = vpop.f32.mrb[0].mxu0
        %459 = vdwg.mxu0
        %vm460 = vcmask 130048
        %v461 = vsel %vm460, %v378, -inf
        %462 = vmax.xlane.f32.xlu0 %v461
        %v463 = vpop.xlane.xlu0 %462
        %v464 = vsel %vm460, %v457, -inf
        %465 = vmax.xlane.f32.xlu0 %v464
        %v466 = vpop.xlane.xlu0 %465
        %v467 = vsub.f32 %v463, 1.0
        %v468 = vsub.f32 %v466, 1.0
        %v469 = vadd.f32 %v467, 0.375
        %v470 = vadd.f32 %v468, 0.375
        %v471 = vsub.f32 %v378, %v469
        %v472 = vsub.f32 %v457, %v470
        %v473 = vmax.f32 %v471, 0.0
        %v474 = vmax.f32 %v472, 0.0
        %v475 = vmul.f32 %v473, %v473
        %v476 = vmul.f32 %v474, %v474
        %v477 = vsel %vm460, %v475, 0.0
        %478 = vadd.xlane.f32.xlu0 %v477
        %v479 = vpop.xlane.xlu0 %478
        %v480 = vsel %vm460, %v476, 0.0
        %481 = vadd.xlane.f32.xlu0 %v480
        %v482 = vpop.xlane.xlu0 %481
        %v483 = vsub.f32 %v479, 1.0
        %v484 = vsub.f32 %v482, 1.0
        %vm485 = vcmp.ge.f32.partialorder %v483, 0.0
        %vm486 = vcmp.ge.f32.partialorder %v484, 0.0
        %v487 = vsel %vm485, %v469, %v467
        %v488 = vsel %vm486, %v470, %v468
        %v489 = vadd.f32 %v487, 0.1875
        %v490 = vadd.f32 %v488, 0.1875
        %v491 = vsub.f32 %v378, %v489
        %v492 = vsub.f32 %v457, %v490
        %v493 = vmax.f32 %v491, 0.0
        %v494 = vmax.f32 %v492, 0.0
        %v495 = vmul.f32 %v493, %v493
        %v496 = vmul.f32 %v494, %v494
        %v497 = vsel %vm460, %v495, 0.0
        %498 = vadd.xlane.f32.xlu0 %v497
        %v499 = vpop.xlane.xlu0 %498
        %v500 = vsel %vm460, %v496, 0.0
        %501 = vadd.xlane.f32.xlu0 %v500
        %v502 = vpop.xlane.xlu0 %501
        %v503 = vsub.f32 %v499, 1.0
        %v504 = vsub.f32 %v502, 1.0
        %vm505 = vcmp.ge.f32.partialorder %v503, 0.0
        %vm506 = vcmp.ge.f32.partialorder %v504, 0.0
        %v507 = vsel %vm505, %v489, %v487
        %v508 = vsel %vm506, %v490, %v488
        %v509 = vadd.f32 %v507, 0.09375
        %v510 = vadd.f32 %v508, 0.09375
        %v511 = vsub.f32 %v378, %v509
        %v512 = vsub.f32 %v457, %v510
        %v513 = vmax.f32 %v511, 0.0
        %v514 = vmax.f32 %v512, 0.0
        %v515 = vmul.f32 %v513, %v513
        %v516 = vmul.f32 %v514, %v514
        %v517 = vsel %vm460, %v515, 0.0
        %518 = vadd.xlane.f32.xlu0 %v517
        %v519 = vpop.xlane.xlu0 %518
        %v520 = vsel %vm460, %v516, 0.0
        %521 = vadd.xlane.f32.xlu0 %v520
        %v522 = vpop.xlane.xlu0 %521
        %v523 = vsub.f32 %v519, 1.0
        %v524 = vsub.f32 %v522, 1.0
        %vm525 = vcmp.ge.f32.partialorder %v523, 0.0
        %vm526 = vcmp.ge.f32.partialorder %v524, 0.0
        %v527 = vsel %vm525, %v509, %v507
        %v528 = vsel %vm526, %v510, %v508
        %v529 = vadd.f32 %v527, 0.046875
        %v530 = vadd.f32 %v528, 0.046875
        %v531 = vsub.f32 %v378, %v529
        %v532 = vsub.f32 %v457, %v530
        %v533 = vmax.f32 %v531, 0.0
        %v534 = vmax.f32 %v532, 0.0
        %v535 = vmul.f32 %v533, %v533
        %v536 = vmul.f32 %v534, %v534
        %v537 = vsel %vm460, %v535, 0.0
        %538 = vadd.xlane.f32.xlu0 %v537
        %v539 = vpop.xlane.xlu0 %538
        %v540 = vsel %vm460, %v536, 0.0
        %541 = vadd.xlane.f32.xlu0 %v540
        %v542 = vpop.xlane.xlu0 %541
        %v543 = vsub.f32 %v539, 1.0
        %v544 = vsub.f32 %v542, 1.0
        %vm545 = vcmp.ge.f32.partialorder %v543, 0.0
        %vm546 = vcmp.ge.f32.partialorder %v544, 0.0
        %v547 = vsel %vm545, %v529, %v527
        %v548 = vsel %vm546, %v530, %v528
        %v549 = vadd.f32 %v547, 0.0234375
        %v550 = vadd.f32 %v548, 0.0234375
        %v551 = vsub.f32 %v378, %v549
        %v552 = vsub.f32 %v457, %v550
        %v553 = vmax.f32 %v551, 0.0
        %v554 = vmax.f32 %v552, 0.0
        %v555 = vmul.f32 %v553, %v553
        %v556 = vmul.f32 %v554, %v554
        %v557 = vsel %vm460, %v555, 0.0
        %558 = vadd.xlane.f32.xlu0 %v557
        %v559 = vpop.xlane.xlu0 %558
        %v560 = vsel %vm460, %v556, 0.0
        %561 = vadd.xlane.f32.xlu0 %v560
        %v562 = vpop.xlane.xlu0 %561
        %v563 = vsub.f32 %v559, 1.0
        %v564 = vsub.f32 %v562, 1.0
        %vm565 = vcmp.ge.f32.partialorder %v563, 0.0
        %vm566 = vcmp.ge.f32.partialorder %v564, 0.0
        %v567 = vsel %vm565, %v549, %v547
        %v568 = vsel %vm566, %v550, %v548
        %v569 = vadd.f32 %v567, 0.01171875
        %v570 = vadd.f32 %v568, 0.01171875
        %v571 = vsub.f32 %v378, %v569
        %v572 = vsub.f32 %v457, %v570
        %v573 = vmax.f32 %v571, 0.0
        %v574 = vmax.f32 %v572, 0.0
        %v575 = vmul.f32 %v573, %v573
        %v576 = vmul.f32 %v574, %v574
        %v577 = vsel %vm460, %v575, 0.0
        %578 = vadd.xlane.f32.xlu0 %v577
        %v579 = vpop.xlane.xlu0 %578
        %v580 = vsel %vm460, %v576, 0.0
        %581 = vadd.xlane.f32.xlu0 %v580
        %v582 = vpop.xlane.xlu0 %581
        %v583 = vsub.f32 %v579, 1.0
        %v584 = vsub.f32 %v582, 1.0
        %vm585 = vcmp.ge.f32.partialorder %v583, 0.0
        %vm586 = vcmp.ge.f32.partialorder %v584, 0.0
        %v587 = vsel %vm585, %v569, %v567
        %v588 = vsel %vm586, %v570, %v568
        %v589 = vadd.f32 %v587, 0.005859375
        %v590 = vadd.f32 %v588, 0.005859375
        %v591 = vsub.f32 %v378, %v589
        %v592 = vsub.f32 %v457, %v590
        %v593 = vmax.f32 %v591, 0.0
        %v594 = vmax.f32 %v592, 0.0
        %v595 = vmul.f32 %v593, %v593
        %v596 = vmul.f32 %v594, %v594
        %v597 = vsel %vm460, %v595, 0.0
        %598 = vadd.xlane.f32.xlu0 %v597
        %v599 = vpop.xlane.xlu0 %598
        %v600 = vsel %vm460, %v596, 0.0
        %601 = vadd.xlane.f32.xlu0 %v600
        %v602 = vpop.xlane.xlu0 %601
        %v603 = vsub.f32 %v599, 1.0
        %v604 = vsub.f32 %v602, 1.0
        %vm605 = vcmp.ge.f32.partialorder %v603, 0.0
        %vm606 = vcmp.ge.f32.partialorder %v604, 0.0
        %v607 = vsel %vm605, %v589, %v587
        %v608 = vsel %vm606, %v590, %v588
        %v609 = vadd.f32 %v607, 0.0029296875
        %v610 = vadd.f32 %v608, 0.0029296875
        %v611 = vsub.f32 %v378, %v609
        %v612 = vsub.f32 %v457, %v610
        %v613 = vmax.f32 %v611, 0.0
        %v614 = vmax.f32 %v612, 0.0
        %v615 = vmul.f32 %v613, %v613
        %v616 = vmul.f32 %v614, %v614
        %v617 = vsel %vm460, %v615, 0.0
        %618 = vadd.xlane.f32.xlu0 %v617
        %v619 = vpop.xlane.xlu0 %618
        %v620 = vsel %vm460, %v616, 0.0
        %621 = vadd.xlane.f32.xlu0 %v620
        %v622 = vpop.xlane.xlu0 %621
        %v623 = vsub.f32 %v619, 1.0
        %v624 = vsub.f32 %v622, 1.0
        %vm625 = vcmp.ge.f32.partialorder %v623, 0.0
        %vm626 = vcmp.ge.f32.partialorder %v624, 0.0
        %v627 = vsel %vm625, %v609, %v607
        %v628 = vsel %vm626, %v610, %v608
        %v629 = vsub.f32 %v378, %v627
        %v630 = vsub.f32 %v457, %v628
        %v631 = vmax.f32 %v629, 0.0
        %v632 = vmax.f32 %v630, 0.0
        %v633 = vmul.f32 %v631, %v631
        %v634 = vmul.f32 %v632, %v632
        %v635 = vsel %vm460, %v633, 0.0
        %636 = vadd.xlane.f32.xlu0 %v635
        %v637 = vpop.xlane.xlu0 %636
        %v638 = vsel %vm460, %v634, 0.0
        %639 = vadd.xlane.f32.xlu0 %v638
        %v640 = vpop.xlane.xlu0 %639
        %v641 = vsub.f32 %v637, 1.0
        %v642 = vsub.f32 %v640, 1.0
        %v643 = vsel %vm460, %v631, 0.0
        %644 = vadd.xlane.f32.xlu0 %v643
        %v645 = vpop.xlane.xlu0 %644
        %v646 = vsel %vm460, %v632, 0.0
        %647 = vadd.xlane.f32.xlu0 %v646
        %v648 = vpop.xlane.xlu0 %647
        %v649 = vmax.f32 %v645, 1e-30
        %v650 = vmax.f32 %v648, 1e-30
        %v651 = vmul.f32 %v641, 0.5
        %v652 = vmul.f32 %v642, 0.5
        %v653 = vrcp.pop %v649
        %v654 = vrcp.pop %v650
        %v655 = vmul.f32 %v651, %v653
        %v656 = vmul.f32 %v652, %v654
        %v657 = vadd.f32 %v627, %v655
        %v658 = vadd.f32 %v628, %v656
        %v659 = vsub.f32 %v378, %v657
        %v660 = vsub.f32 %v457, %v658
        %v661 = vmax.f32 %v659, 0.0
        %v662 = vmax.f32 %v660, 0.0
        %v663 = vmul.f32 %v661, %v661
        %v664 = vmul.f32 %v662, %v662
        %v665 = vsel %vm460, %v663, 0.0
        %666 = vadd.xlane.f32.xlu0 %v665
        %v667 = vpop.xlane.xlu0 %666
        %v668 = vsel %vm460, %v664, 0.0
        %669 = vadd.xlane.f32.xlu0 %v668
        %v670 = vpop.xlane.xlu0 %669
        %v671 = vsub.f32 %v667, 1.0
        %v672 = vsub.f32 %v670, 1.0
        %v673 = vsel %vm460, %v661, 0.0
        %674 = vadd.xlane.f32.xlu0 %v673
        %v675 = vpop.xlane.xlu0 %674
        %v676 = vsel %vm460, %v662, 0.0
        %677 = vadd.xlane.f32.xlu0 %v676
        %v678 = vpop.xlane.xlu0 %677
        %v679 = vmax.f32 %v675, 1e-30
        %v680 = vmax.f32 %v678, 1e-30
        %v681 = vmul.f32 %v671, 0.5
        %v682 = vmul.f32 %v672, 0.5
        %v683 = vrcp.pop %v679
        %v684 = vrcp.pop %v680
        %v685 = vmul.f32 %v681, %v683
        %v686 = vmul.f32 %v682, %v684
        %v687 = vadd.f32 %v657, %v685
        %v688 = vadd.f32 %v658, %v686
        %v689 = vsub.f32 %v378, %v687
        %v690 = vsub.f32 %v457, %v688
        %v691 = vmax.f32 %v689, 0.0
        %v692 = vmax.f32 %v690, 0.0
        %v693 = vmul.f32 %v691, %v691
        %v694 = vmul.f32 %v692, %v692
        %v695 = vsel %vm460, %v693, 0.0
        %696 = vadd.xlane.f32.xlu0 %v695
        %v697 = vpop.xlane.xlu0 %696
        %v698 = vsel %vm460, %v694, 0.0
        %699 = vadd.xlane.f32.xlu0 %v698
        %v700 = vpop.xlane.xlu0 %699
        %v702 = vsel %vm460, %v693, 0
        %704 = vmatprep.subr.mxu0 0.0
        %705 = vmatpush1.msra.mxu0 %v295
        %706 = vmatprep.subr.mxu0 0.0
        %707 = vmatpush1.msra.mxu0 %v296
        %708 = vmatprep.subr.mxu0 0.0
        %709 = vmatpush1.msra.mxu0 0.0
        %710 = vmatprep.subr.mxu0 0.0
        %711 = vmatpush1.msra.mxu0 0.0
        %712 = vmatprep.subr.mxu0 0.0
        %713 = vmatpush1.msra.mxu0 0.0
        %714 = vmatprep.subr.mxu0 0.0
        %715 = vmatpush1.msra.mxu0 0.0
        %716 = vmatprep.subr.mxu0 0.0
        %717 = vmatpush1.msra.mxu0 0.0
        %718 = vmatprep.subr.mxu0 0.0
        %719 = vmatpush1.msra.mxu0 0.0
        %720 = vmatprep.subr.mxu0 0.0
        %721 = vmatpush1.msra.mxu0 0.0
        %722 = vmatprep.subr.mxu0 0.0
        %723 = vmatpush1.msra.mxu0 0.0
        %724 = vmatprep.subr.mxu0 0.0
        %725 = vmatpush1.msra.mxu0 0.0
        %726 = vmatprep.subr.mxu0 0.0
        %727 = vmatpush1.msra.mxu0 0.0
        %728 = vmatprep.subr.mxu0 0.0
        %729 = vmatpush1.msra.mxu0 0.0
        %730 = vmatprep.subr.mxu0 0.0
        %731 = vmatpush1.msra.mxu0 0.0
        %732 = vmatprep.subr.mxu0 0.0
        %733 = vmatpush1.msra.mxu0 0.0
        %734 = vmatprep.subr.mxu0 0.0
        %735 = vmatpush1.msra.mxu0 0.0
        %736 = vmatprep.subr.mxu0 0.0
        %737 = vmatpush1.msra.mxu0 0.0
        %738 = vmatprep.subr.mxu0 0.0
        %739 = vmatpush1.msra.mxu0 0.0
        %740 = vmatprep.subr.mxu0 0.0
        %741 = vmatpush1.msra.mxu0 0.0
        %742 = vmatprep.subr.mxu0 0.0
        %743 = vmatpush1.msra.mxu0 0.0
        %744 = vmatprep.subr.mxu0 0.0
        %745 = vmatpush1.msra.mxu0 0.0
        %746 = vmatprep.subr.mxu0 0.0
        %747 = vmatpush1.msra.mxu0 0.0
        %748 = vmatprep.subr.mxu0 0.0
        %749 = vmatpush1.msra.mxu0 0.0
        %750 = vmatprep.subr.mxu0 0.0
        %751 = vmatpush1.msra.mxu0 0.0
        %752 = vmatprep.subr.mxu0 0.0
        %753 = vmatpush1.msra.mxu0 0.0
        %754 = vmatprep.subr.mxu0 0.0
        %755 = vmatpush1.msra.mxu0 0.0
        %756 = vmatprep.subr.mxu0 0.0
        %757 = vmatpush1.msra.mxu0 0.0
        %758 = vmatprep.subr.mxu0 0.0
        %759 = vmatpush1.msra.mxu0 0.0
        %760 = vmatprep.subr.mxu0 0.0
        %761 = vmatpush1.msra.mxu0 0.0
        %762 = vmatprep.subr.mxu0 0.0
        %763 = vmatpush1.msra.mxu0 0.0
        %764 = vmatprep.subr.mxu0 0.0
        %765 = vmatpush1.msra.mxu0 0.0
        %766 = vmatprep.subr.mxu0 0.0
        %767 = vmatpush1.msra.mxu0 0.0
        %768 = vmatprep.mubr.f32.mxu0 0.0
        %769 = vmatmul.mubr.f32.gmra.mrb[0].mxu0 %v702
        %v770 = vpop.f32.mrb[0].mxu0
        %v771 = vadd.f32 0.0, %v770
        %v772 = vpop.f32.mrb[0].mxu0
        %773 = vdwg.mxu0
        %v775 = vsel %vm460, %v694, 0
        %777 = vmatprep.subr.mxu0 0.0
        %778 = vmatpush1.msra.mxu0 %v297
        %779 = vmatprep.subr.mxu0 0.0
        %780 = vmatpush1.msra.mxu0 %v298
        %781 = vmatprep.subr.mxu0 0.0
        %782 = vmatpush1.msra.mxu0 0.0
        %783 = vmatprep.subr.mxu0 0.0
        %784 = vmatpush1.msra.mxu0 0.0
        %785 = vmatprep.subr.mxu0 0.0
        %786 = vmatpush1.msra.mxu0 0.0
        %787 = vmatprep.subr.mxu0 0.0
        %788 = vmatpush1.msra.mxu0 0.0
        %789 = vmatprep.subr.mxu0 0.0
        %790 = vmatpush1.msra.mxu0 0.0
        %791 = vmatprep.subr.mxu0 0.0
        %792 = vmatpush1.msra.mxu0 0.0
        %793 = vmatprep.subr.mxu0 0.0
        %794 = vmatpush1.msra.mxu0 0.0
        %795 = vmatprep.subr.mxu0 0.0
        %796 = vmatpush1.msra.mxu0 0.0
        %797 = vmatprep.subr.mxu0 0.0
        %798 = vmatpush1.msra.mxu0 0.0
        %799 = vmatprep.subr.mxu0 0.0
        %800 = vmatpush1.msra.mxu0 0.0
        %801 = vmatprep.subr.mxu0 0.0
        %802 = vmatpush1.msra.mxu0 0.0
        %803 = vmatprep.subr.mxu0 0.0
        %804 = vmatpush1.msra.mxu0 0.0
        %805 = vmatprep.subr.mxu0 0.0
        %806 = vmatpush1.msra.mxu0 0.0
        %807 = vmatprep.subr.mxu0 0.0
        %808 = vmatpush1.msra.mxu0 0.0
        %809 = vmatprep.subr.mxu0 0.0
        %810 = vmatpush1.msra.mxu0 0.0
        %811 = vmatprep.subr.mxu0 0.0
        %812 = vmatpush1.msra.mxu0 0.0
        %813 = vmatprep.subr.mxu0 0.0
        %814 = vmatpush1.msra.mxu0 0.0
        %815 = vmatprep.subr.mxu0 0.0
        %816 = vmatpush1.msra.mxu0 0.0
        %817 = vmatprep.subr.mxu0 0.0
        %818 = vmatpush1.msra.mxu0 0.0
        %819 = vmatprep.subr.mxu0 0.0
        %820 = vmatpush1.msra.mxu0 0.0
        %821 = vmatprep.subr.mxu0 0.0
        %822 = vmatpush1.msra.mxu0 0.0
        %823 = vmatprep.subr.mxu0 0.0
        %824 = vmatpush1.msra.mxu0 0.0
        %825 = vmatprep.subr.mxu0 0.0
        %826 = vmatpush1.msra.mxu0 0.0
        %827 = vmatprep.subr.mxu0 0.0
        %828 = vmatpush1.msra.mxu0 0.0
        %829 = vmatprep.subr.mxu0 0.0
        %830 = vmatpush1.msra.mxu0 0.0
        %831 = vmatprep.subr.mxu0 0.0
        %832 = vmatpush1.msra.mxu0 0.0
        %833 = vmatprep.subr.mxu0 0.0
        %834 = vmatpush1.msra.mxu0 0.0
        %835 = vmatprep.subr.mxu0 0.0
        %836 = vmatpush1.msra.mxu0 0.0
        %837 = vmatprep.subr.mxu0 0.0
        %838 = vmatpush1.msra.mxu0 0.0
        %839 = vmatprep.subr.mxu0 0.0
        %840 = vmatpush1.msra.mxu0 0.0
        %841 = vmatprep.mubr.f32.mxu0 0.0
        %842 = vmatmul.mubr.f32.gmra.mrb[0].mxu0 %v775
        %v843 = vpop.f32.mrb[0].mxu0
        %v844 = vadd.f32 0.0, %v843
        %v845 = vpop.f32.mrb[0].mxu0
        %846 = vdwg.mxu0
        %v847 = vrcp.pop %v697
        %v848 = vrcp.pop %v700
        %v849 = vmul.f32 %v771, %v847
        %v850 = vmul.f32 %v844, %v848
        %851 = vst.msk [vmem:[%s284] sm:$0xff] %vm301, %v849
        %852 = vst.msk [vmem:[%s284 + $0x8] sm:$0xff] %vm301, %v850
        %s853 = sand.u32 %s125, 1
        %s854 = scalar_lea.sflag [#allocation4], %s853
        %s855 = sand.u32 %s125, 1
        %s856 = smul.addr %s855, 16
        %s857 = scalar_lea.vmem [#allocation8], %s856
        // Predicated region
        $region45: #{tpu_custom_call.1} parent=31 // pred_check
          %p858 = pneg %p135
        $region46: #{tpu_custom_call.1} parent=31 // pred_check_branch
          %860 = sbr.rel (%p858) target = $region48
        $region47: #{tpu_custom_call.1} parent=31 // pred_region
          %s861 = smul.u32 2, %s27
          %s863 = ssub.s32 256, 256
          %864 = vsyncadd %s854, %s863
          %s865 = sadd.s32 %s28, %s861
          %s866 = smul.addr %s865, 128
          %s867 = scalar_lea.hbm %s3, %s866
          %s868 = sshll.u32 %s857, 4
          %s869 = int_to_ptr.vmem [resolvable:$true] %s868
          %874 = dma.vmem_to_hbm [thread:$0]  %s869, 256, %s867, %s854, 128, 128, 8
        $region48: #{tpu_custom_call.1} parent=31 // pred_fallthru
          _
      $region32: #{tpu_custom_call.1} parent=5 // pred_fallthru
        _
      %p875 = scmp.le.s32.totalorder 2, %s18
      // Predicated region
      $region49: #{tpu_custom_call.1} parent=5 // pred_check
        %p876 = pneg %p875
      $region50: #{tpu_custom_call.1} parent=5 // pred_check_branch
        %878 = sbr.rel (%p876) target = $region52
      $region51: #{tpu_custom_call.1} parent=5 // pred_region
        %s879 = ssub.s32 %s18, 2
        // Predicated region
        $region53: #{tpu_custom_call.1} parent=51 // pred_check
          %p880 = pneg %p141
        $region54: #{tpu_custom_call.1} parent=51 // pred_check_branch
          %882 = sbr.rel (%p880) target = $region56
        $region55: #{tpu_custom_call.1} parent=51 // pred_region
          %s883 = sand.u32 %s126, 1
          %s884 = scalar_lea.sflag [#allocation4], %s883
          %s885 = sand.u32 %s126, 1
          %s886 = smul.addr %s885, 16
          %s887 = scalar_lea.vmem [#allocation8], %s886
          %888 = dma.done %s884, 256
        $region56: #{tpu_custom_call.1} parent=51 // pred_fallthru
          _
      $region52: #{tpu_custom_call.1} parent=5 // pred_fallthru
        _
    $region6: #{tpu_custom_call.1} parent=1 // loop_footer
      %s22 = sadd.s32 1, %s18
    $region7: #{tpu_custom_call.1} parent=1 // loop_footer_branch
      %17 = sbr.rel target = $region3
    $region8: #{tpu_custom_call.1} parent=1 // loop_exit
      _
    %889 = vsyncpa [#allocation3], 1
    %s890 = scalar_lea.sflag [#allocation3], 1
    %891 = vsyncpa %s890, 1
    %892 = vsyncpa [#allocation6], 1
    %s893 = scalar_lea.sflag [#allocation6], 1
    %894 = vsyncpa %s893, 1
    %895 = vsyncpa [#allocation4], 1
    %s896 = scalar_lea.sflag [#allocation4], 1
    %897 = vsyncpa %s896, 1

</llo_original>
